<compile_context>
chip_gen: v6e
topology: v6e:2x2x1
jax: 0.10.0
libtpu: 0.0.40
codegen_flags: <defaults>
</compile_context>

<pallas_src>
import functools

import jax
import jax.numpy as jnp
from jax.experimental import pallas as pl
from jax.experimental.pallas import tpu as pltpu


def _ce_dice_partial_kernel(w_smem, logits_ref, tgt_ref,
                            ce_num_ref, ce_den_ref, inter_ref,
                            *, C, tile_rows, tiles_per_core, valid_rows, needs_mask):
    """One (n, p, row-tile) grid step: accumulate CE / dice partial sums."""
    t = pl.program_id(2)

    logits = logits_ref[0].astype(jnp.float32)       # (C, tH, L) upcast in-kernel
    tgt = tgt_ref[0].astype(jnp.int32)                # (tH, L)

    # Softmax statistics over the class axis (leading dim -> per-vreg elementwise).
    m = jnp.max(logits, axis=0)                       # (tH, L)
    ex = jnp.exp(logits - m[None, :, :])              # (C, tH, L)
    s = jnp.sum(ex, axis=0)                           # (tH, L)
    lse = m + jnp.log(s)                              # (tH, L) log-sum-exp

    # Target-class logit and per-pixel CE weight via unrolled per-class selects:
    # (tH, L)-sized compares/selects, weights read as SMEM scalars -- no (C,tH,L)
    # iota, one-hot, bool->f32 convert or mask multiplies.
    l_t = jnp.zeros_like(m)
    w_t = jnp.zeros_like(m)
    for c in range(C):
        sel = tgt == c
        l_t = jnp.where(sel, logits[c], l_t)
        w_t = jnp.where(sel, w_smem[c], w_t)

    nll = lse - l_t                  # -log softmax at the target class
    p_t = jnp.exp(l_t - lse)         # softmax prob of the target class (no divide)

    if needs_mask:
        # Tail / over-split tiles: zero contributions from rows beyond the image.
        p = pl.program_id(1)
        row0 = (p * tiles_per_core + t) * tile_rows
        rows = row0 + jax.lax.broadcasted_iota(jnp.int32, nll.shape, 0)
        valid = rows < valid_rows
        zero = jnp.zeros_like(nll)
        nll = jnp.where(valid, nll, zero)
        w_t = jnp.where(valid, w_t, zero)
        p_t = jnp.where(valid, p_t, zero)

    # Per-lane partials: sublane reduce only; lane reduce happens once in the epilogue.
    ce_num_p = jnp.sum(w_t * nll, axis=0, keepdims=True)      # (1, L)
    ce_den_p = jnp.sum(w_t, axis=0, keepdims=True)             # (1, L)
    inter_p = jnp.sum(p_t, axis=0, keepdims=True)              # (1, L)

    @pl.when(t == 0)
    def _():
        ce_num_ref[...] = jnp.zeros_like(ce_num_ref)
        ce_den_ref[...] = jnp.zeros_like(ce_den_ref)
        inter_ref[...] = jnp.zeros_like(inter_ref)

    ce_num_ref[0, 0] += ce_num_p
    ce_den_ref[0, 0] += ce_den_p
    inter_ref[0, 0] += inter_p


def _pick_tile_rows(R, C, L, logit_isize, tgt_isize, budget_bytes):
    """Largest row tile whose estimated VMEM working set fits the budget.

    Estimate = double-buffered native logits/targets blocks + ~4 f32-sized in-kernel
    temporaries (upcast logits, exp, fused select temps).  Tile rows are a multiple of
    32 (covers (8,128) f32, (16,128) bf16 and (32,128) int8 sublane tiling) unless the
    full extent is used.
    """
    per_row = C * L * (2 * logit_isize + 16) + 2 * L * tgt_isize
    step = 32
    if R <= step:
        return int(R)
    rows = (budget_bytes // per_row) // step * step
    rows = max(step, rows)
    return int(min(R, rows))


def combined_ce_dice_loss(outputs, targets, weight_ce, weight_dice, eps=1e-10,
                          tile_budget_bytes=32 * 1024 * 1024):
    """outputs: (N, C, H, W) logits (f32/bf16); targets: (N, H, W) int; weight_ce: (C,)."""
    N, C, H, W = outputs.shape

    # Targets stay in their native narrow integer dtype (saves HBM bytes); upcast in-kernel.
    if not (jnp.issubdtype(targets.dtype, jnp.integer) and targets.dtype.itemsize <= 4):
        targets = targets.astype(jnp.int32)
    w = jnp.asarray(weight_ce, jnp.float32).reshape(C)

    # Lane-dense layout: fold contiguous (H, W) into 128-wide rows when possible.
    if W % 128 == 0:
        folded = False
        R, L = H, W
    elif (H * W) % 128 == 0 and 128 % W == 0:
        folded = True
        R, L = (H * W) // 128, 128
        outputs = outputs.reshape(N, C, R, L)
        targets = targets.reshape(N, R, L)
    else:
        # TODO(synk): irregular W (neither a multiple nor a divisor of 128) keeps W as
        # the (padded) lane dim; a gather-based repack is not worth the extra traffic.
        folded = False
        R, L = H, W

    tH = _pick_tile_rows(R, C, L, outputs.dtype.itemsize, targets.dtype.itemsize,
                         tile_budget_bytes)
    n_tiles = pl.cdiv(R, tH)
    P = 2 if n_tiles >= 2 else 1          # second parallel axis: keeps both v7x TCs busy
    T = pl.cdiv(n_tiles, P)
    needs_mask = (P * T * tH) != R
    last_tile = n_tiles - 1

    kernel = functools.partial(
        _ce_dice_partial_kernel,
        C=C, tile_rows=tH, tiles_per_core=T, valid_rows=R, needs_mask=needs_mask)

    def logits_map(n, p, t, _w):
        return (n, 0, jnp.minimum(p * T + t, last_tile), 0)

    def tgt_map(n, p, t, _w):
        return (n, jnp.minimum(p * T + t, last_tile), 0)

    out_shapes = tuple(jax.ShapeDtypeStruct((N, P, 1, L), jnp.float32) for _ in range(3))
    out_spec = pl.BlockSpec((1, 1, 1, L), lambda n, p, t, _w: (n, p, 0, 0))

    ce_num, ce_den, inter = pl.pallas_call(
        kernel,
        out_shape=out_shapes,
        grid_spec=pltpu.PrefetchScalarGridSpec(
            num_scalar_prefetch=1,        # CE class weights -> SMEM scalars
            grid=(N, P, T),
            in_specs=[
                pl.BlockSpec((1, C, tH, L), logits_map),   # NCHW logits, no transpose
                pl.BlockSpec((1, tH, L), tgt_map),          # targets, native dtype
            ],
            out_specs=[out_spec, out_spec, out_spec],
        ),
        compiler_params=pltpu.CompilerParams(
            dimension_semantics=("parallel", "parallel", "arbitrary"),
            vmem_limit_bytes=48 * 1024 * 1024,              # safe on v7x (64 MiB VMEM)
        ),
    )(w, outputs, targets)

    # Tiny epilogue.  Exact algebra: union reduced over (N, C, H) == 2*N*H per column.
    ce = jnp.sum(ce_num) / jnp.sum(ce_den)
    inter_l = jnp.sum(inter, axis=(0, 1, 2))                 # (L,)
    if folded:
        inter_w = inter_l.reshape(128 // W, W).sum(axis=0)   # lane l <-> column l % W
    else:
        inter_w = inter_l                                    # L == W
    union_w = jnp.float32(2 * N * H)
    dice = 1.0 - (2.0 * inter_w + eps) / (union_w + inter_w + eps)
    return ce + weight_dice * jnp.mean(dice)


def _reference(outputs, targets, weight_ce, weight_dice):
    # Pure-JAX mirror of the PyTorch forward, for the correctness check.
    eps = 1e-10
    C = outputs.shape[1]
    logp = jax.nn.log_softmax(outputs.astype(jnp.float32), axis=1)
    probs = jnp.exp(logp)
    oh = jax.nn.one_hot(targets.astype(jnp.int32), C, dtype=jnp.float32)  # (N,H,W,C)
    oh = jnp.transpose(oh, (0, 3, 1, 2))                                  # (N,C,H,W)
    pix_loss = -jnp.sum(oh * logp, axis=1)
    pix_w = jnp.sum(oh * weight_ce[None, :, None, None], axis=1)
    ce = jnp.sum(pix_w * pix_loss) / jnp.sum(pix_w)
    inter = jnp.sum(probs * oh, axis=(0, 1, 2))
    union = jnp.sum(probs + oh, axis=(0, 1, 2))
    dice = 1.0 - (2.0 * inter + eps) / (union + inter + eps)
    return ce + weight_dice * jnp.mean(dice)


if __name__ == "__main__":
    key = jax.random.PRNGKey(0)

    # Test 1: small shape from the module spec; exercises the (H,W)->(R,128) lane fold
    # and the full-extent (single-tile) path.
    k1, k2 = jax.random.split(key)
    N, C, H, W = 2, 4, 16, 16
    outputs = jax.random.normal(k1, (N, C, H, W), dtype=jnp.float32)
    targets = jax.random.randint(k2, (N, H, W), 0, C, dtype=jnp.int32)
    weight_ce = jnp.array([1.0, 2.0, 0.5, 1.5], dtype=jnp.float32)
    weight_dice = 0.5

    loss = combined_ce_dice_loss(outputs, targets, weight_ce, weight_dice)
    loss = jax.block_until_ready(loss)
    ref = _reference(outputs, targets, weight_ce, weight_dice)
    assert jnp.allclose(loss, ref, rtol=1e-5, atol=1e-5), (loss, ref)

    # Test 2: exercises multi-tile streaming, the second parallel (dual-TC) axis,
    # tail-tile masking, clamped over-split tile indices and narrow (uint8) targets.
    k3, k4 = jax.random.split(k2)
    N2, C2, H2, W2 = 1, 5, 80, 128
    outputs2 = jax.random.normal(k3, (N2, C2, H2, W2), dtype=jnp.float32)
    targets2 = jax.random.randint(k4, (N2, H2, W2), 0, C2, dtype=jnp.int32).astype(jnp.uint8)
    weight_ce2 = jnp.array([1.0, 0.5, 2.0, 1.5, 0.75], dtype=jnp.float32)

    loss2 = combined_ce_dice_loss(outputs2, targets2, weight_ce2, weight_dice,
                                  tile_budget_bytes=256 * 1024)
    loss2 = jax.block_until_ready(loss2)
    ref2 = _reference(outputs2, targets2, weight_ce2, weight_dice)
    assert jnp.allclose(loss2, ref2, rtol=1e-4, atol=1e-4), (loss2, ref2)

    print("KERNEL_OK")
</pallas_src>

<mosaic_0001>
module attributes {stable_mosaic.version = 11 : i64} {
  func.func @_ce_dice_partial_kernel(%arg0: i32, %arg1: i32, %arg2: i32, %arg3: memref<4xf32, #tpu.memory_space<smem>>, %arg4: memref<1x4x2x128xf32, #tpu.memory_space<vmem>>, %arg5: memref<1x2x128xi32, #tpu.memory_space<vmem>>, %arg6: memref<1x1x1x128xf32, #tpu.memory_space<vmem>>, %arg7: memref<1x1x1x128xf32, #tpu.memory_space<vmem>>, %arg8: memref<1x1x1x128xf32, #tpu.memory_space<vmem>>) attributes {dimension_semantics = [#tpu.dimension_semantics<parallel>, #tpu.dimension_semantics<parallel>, #tpu.dimension_semantics<arbitrary>], iteration_bounds = array<i64: 2, 1, 1>, scalar_prefetch = 1 : i64, scratch_operands = 0 : i64, tpu.core_type = #tpu.core_type<tc>, window_params = [{transform_indices = @transform_0, window_bounds = array<i64: 1, 4, 2, 128>}, {transform_indices = @transform_1, window_bounds = array<i64: 1, 2, 128>}, {transform_indices = @transform_2, window_bounds = array<i64: 1, 1, 1, 128>}, {transform_indices = @transform_3, window_bounds = array<i64: 1, 1, 1, 128>}, {transform_indices = @transform_4, window_bounds = array<i64: 1, 1, 1, 128>}]} {
    %c0 = arith.constant 0 : index
    %c0_0 = arith.constant 0 : index
    %c0_1 = arith.constant 0 : index
    %c0_2 = arith.constant 0 : index
    %0 = vector.load %arg4[%c0, %c0_0, %c0_1, %c0_2] : memref<1x4x2x128xf32, #tpu.memory_space<vmem>>, vector<1x4x2x128xf32>
    %1 = vector.shape_cast %0 : vector<1x4x2x128xf32> to vector<4x2x128xf32>
    %c0_3 = arith.constant 0 : index
    %c0_4 = arith.constant 0 : index
    %c0_5 = arith.constant 0 : index
    %2 = vector.load %arg5[%c0_3, %c0_4, %c0_5] : memref<1x2x128xi32, #tpu.memory_space<vmem>>, vector<1x2x128xi32>
    %3 = vector.shape_cast %2 : vector<1x2x128xi32> to vector<2x128xi32>
    %cst = arith.constant dense<0xFF800000> : vector<2x128xf32>
    %4 = vector.multi_reduction <maximumf>, %1, %cst [0] : vector<4x2x128xf32> to vector<2x128xf32>
    %5 = vector.shape_cast %4 : vector<2x128xf32> to vector<1x2x128xf32>
    %6 = vector.broadcast %5 : vector<1x2x128xf32> to vector<4x2x128xf32>
    %7 = arith.subf %1, %6 : vector<4x2x128xf32>
    %8 = math.exp %7 : vector<4x2x128xf32>
    %cst_6 = arith.constant dense<0.000000e+00> : vector<2x128xf32>
    %9 = vector.multi_reduction <add>, %8, %cst_6 [0] : vector<4x2x128xf32> to vector<2x128xf32>
    %10 = math.log %9 : vector<2x128xf32>
    %11 = arith.addf %4, %10 : vector<2x128xf32>
    %cst_7 = arith.constant 0.000000e+00 : f32
    %12 = vector.broadcast %cst_7 : f32 to vector<2x128xf32>
    %cst_8 = arith.constant 0.000000e+00 : f32
    %13 = vector.broadcast %cst_8 : f32 to vector<2x128xf32>
    %c0_i32 = arith.constant 0 : i32
    %14 = vector.broadcast %c0_i32 : i32 to vector<2x128xi32>
    %15 = arith.cmpi eq, %3, %14 : vector<2x128xi32>
    %16 = vector.extract_strided_slice %1 {offsets = [0, 0, 0], sizes = [1, 2, 128], strides = [1, 1, 1]} : vector<4x2x128xf32> to vector<1x2x128xf32>
    %17 = vector.shape_cast %16 : vector<1x2x128xf32> to vector<2x128xf32>
    %18 = arith.select %15, %17, %12 : vector<2x128xi1>, vector<2x128xf32>
    %c0_9 = arith.constant 0 : index
    %19 = memref.load %arg3[%c0_9] : memref<4xf32, #tpu.memory_space<smem>>
    %20 = vector.broadcast %19 : f32 to vector<2x128xf32>
    %21 = arith.select %15, %20, %13 : vector<2x128xi1>, vector<2x128xf32>
    %c1_i32 = arith.constant 1 : i32
    %22 = vector.broadcast %c1_i32 : i32 to vector<2x128xi32>
    %23 = arith.cmpi eq, %3, %22 : vector<2x128xi32>
    %24 = vector.extract_strided_slice %1 {offsets = [1, 0, 0], sizes = [1, 2, 128], strides = [1, 1, 1]} : vector<4x2x128xf32> to vector<1x2x128xf32>
    %25 = vector.shape_cast %24 : vector<1x2x128xf32> to vector<2x128xf32>
    %26 = arith.select %23, %25, %18 : vector<2x128xi1>, vector<2x128xf32>
    %c1 = arith.constant 1 : index
    %27 = memref.load %arg3[%c1] : memref<4xf32, #tpu.memory_space<smem>>
    %28 = vector.broadcast %27 : f32 to vector<2x128xf32>
    %29 = arith.select %23, %28, %21 : vector<2x128xi1>, vector<2x128xf32>
    %c2_i32 = arith.constant 2 : i32
    %30 = vector.broadcast %c2_i32 : i32 to vector<2x128xi32>
    %31 = arith.cmpi eq, %3, %30 : vector<2x128xi32>
    %32 = vector.extract_strided_slice %1 {offsets = [2, 0, 0], sizes = [1, 2, 128], strides = [1, 1, 1]} : vector<4x2x128xf32> to vector<1x2x128xf32>
    %33 = vector.shape_cast %32 : vector<1x2x128xf32> to vector<2x128xf32>
    %34 = arith.select %31, %33, %26 : vector<2x128xi1>, vector<2x128xf32>
    %c2 = arith.constant 2 : index
    %35 = memref.load %arg3[%c2] : memref<4xf32, #tpu.memory_space<smem>>
    %36 = vector.broadcast %35 : f32 to vector<2x128xf32>
    %37 = arith.select %31, %36, %29 : vector<2x128xi1>, vector<2x128xf32>
    %c3_i32 = arith.constant 3 : i32
    %38 = vector.broadcast %c3_i32 : i32 to vector<2x128xi32>
    %39 = arith.cmpi eq, %3, %38 : vector<2x128xi32>
    %40 = vector.extract_strided_slice %1 {offsets = [3, 0, 0], sizes = [1, 2, 128], strides = [1, 1, 1]} : vector<4x2x128xf32> to vector<1x2x128xf32>
    %41 = vector.shape_cast %40 : vector<1x2x128xf32> to vector<2x128xf32>
    %42 = arith.select %39, %41, %34 : vector<2x128xi1>, vector<2x128xf32>
    %c3 = arith.constant 3 : index
    %43 = memref.load %arg3[%c3] : memref<4xf32, #tpu.memory_space<smem>>
    %44 = vector.broadcast %43 : f32 to vector<2x128xf32>
    %45 = arith.select %39, %44, %37 : vector<2x128xi1>, vector<2x128xf32>
    %46 = arith.subf %11, %42 : vector<2x128xf32>
    %47 = arith.subf %42, %11 : vector<2x128xf32>
    %48 = math.exp %47 : vector<2x128xf32>
    %49 = arith.mulf %45, %46 : vector<2x128xf32>
    %cst_10 = arith.constant dense<0.000000e+00> : vector<128xf32>
    %50 = vector.multi_reduction <add>, %49, %cst_10 [0] : vector<2x128xf32> to vector<128xf32>
    %51 = vector.shape_cast %50 : vector<128xf32> to vector<1x128xf32>
    %cst_11 = arith.constant dense<0.000000e+00> : vector<128xf32>
    %52 = vector.multi_reduction <add>, %45, %cst_11 [0] : vector<2x128xf32> to vector<128xf32>
    %53 = vector.shape_cast %52 : vector<128xf32> to vector<1x128xf32>
    %cst_12 = arith.constant dense<0.000000e+00> : vector<128xf32>
    %54 = vector.multi_reduction <add>, %48, %cst_12 [0] : vector<2x128xf32> to vector<128xf32>
    %55 = vector.shape_cast %54 : vector<128xf32> to vector<1x128xf32>
    %c0_i32_13 = arith.constant 0 : i32
    %56 = arith.cmpi eq, %arg2, %c0_i32_13 : i32
    %57 = arith.extui %56 : i1 to i32
    %c0_i32_14 = arith.constant 0 : i32
    %58 = arith.cmpi ne, %57, %c0_i32_14 : i32
    scf.if %58 {
      %cst_39 = arith.constant 0.000000e+00 : f32
      %77 = vector.broadcast %cst_39 : f32 to vector<1x1x1x128xf32>
      %c0_40 = arith.constant 0 : index
      %c0_41 = arith.constant 0 : index
      %c0_42 = arith.constant 0 : index
      %c0_43 = arith.constant 0 : index
      %78 = vector.load %arg6[%c0_40, %c0_41, %c0_42, %c0_43] : memref<1x1x1x128xf32, #tpu.memory_space<vmem>>, vector<1x1x1x128xf32>
      tpu.vector_store %arg6[%c0_40, %c0_41, %c0_42, %c0_43], %77 {strides = array<i32>} : memref<1x1x1x128xf32, #tpu.memory_space<vmem>>, vector<1x1x1x128xf32>,
      %cst_44 = arith.constant 0.000000e+00 : f32
      %79 = vector.broadcast %cst_44 : f32 to vector<1x1x1x128xf32>
      %c0_45 = arith.constant 0 : index
      %c0_46 = arith.constant 0 : index
      %c0_47 = arith.constant 0 : index
      %c0_48 = arith.constant 0 : index
      %80 = vector.load %arg7[%c0_45, %c0_46, %c0_47, %c0_48] : memref<1x1x1x128xf32, #tpu.memory_space<vmem>>, vector<1x1x1x128xf32>
      tpu.vector_store %arg7[%c0_45, %c0_46, %c0_47, %c0_48], %79 {strides = array<i32>} : memref<1x1x1x128xf32, #tpu.memory_space<vmem>>, vector<1x1x1x128xf32>,
      %cst_49 = arith.constant 0.000000e+00 : f32
      %81 = vector.broadcast %cst_49 : f32 to vector<1x1x1x128xf32>
      %c0_50 = arith.constant 0 : index
      %c0_51 = arith.constant 0 : index
      %c0_52 = arith.constant 0 : index
      %c0_53 = arith.constant 0 : index
      %82 = vector.load %arg8[%c0_50, %c0_51, %c0_52, %c0_53] : memref<1x1x1x128xf32, #tpu.memory_space<vmem>>, vector<1x1x1x128xf32>
      tpu.vector_store %arg8[%c0_50, %c0_51, %c0_52, %c0_53], %81 {strides = array<i32>} : memref<1x1x1x128xf32, #tpu.memory_space<vmem>>, vector<1x1x1x128xf32>,
    } else {
    }
    %c0_15 = arith.constant 0 : index
    %c0_16 = arith.constant 0 : index
    %c0_17 = arith.constant 0 : index
    %c0_18 = arith.constant 0 : index
    %59 = vector.load %arg6[%c0_15, %c0_16, %c0_17, %c0_18] : memref<1x1x1x128xf32, #tpu.memory_space<vmem>>, vector<1x1x1x128xf32>
    %60 = vector.shape_cast %59 : vector<1x1x1x128xf32> to vector<1x128xf32>
    %61 = arith.addf %60, %51 : vector<1x128xf32>
    %c0_19 = arith.constant 0 : index
    %c0_20 = arith.constant 0 : index
    %c0_21 = arith.constant 0 : index
    %c0_22 = arith.constant 0 : index
    %62 = vector.load %arg6[%c0_19, %c0_20, %c0_21, %c0_22] : memref<1x1x1x128xf32, #tpu.memory_space<vmem>>, vector<1x1x1x128xf32>
    %63 = vector.shape_cast %62 : vector<1x1x1x128xf32> to vector<1x128xf32>
    %64 = vector.shape_cast %61 : vector<1x128xf32> to vector<1x1x1x128xf32>
    tpu.vector_store %arg6[%c0_19, %c0_20, %c0_21, %c0_22], %64 {strides = array<i32>} : memref<1x1x1x128xf32, #tpu.memory_space<vmem>>, vector<1x1x1x128xf32>,
    %c0_23 = arith.constant 0 : index
    %c0_24 = arith.constant 0 : index
    %c0_25 = arith.constant 0 : index
    %c0_26 = arith.constant 0 : index
    %65 = vector.load %arg7[%c0_23, %c0_24, %c0_25, %c0_26] : memref<1x1x1x128xf32, #tpu.memory_space<vmem>>, vector<1x1x1x128xf32>
    %66 = vector.shape_cast %65 : vector<1x1x1x128xf32> to vector<1x128xf32>
    %67 = arith.addf %66, %53 : vector<1x128xf32>
    %c0_27 = arith.constant 0 : index
    %c0_28 = arith.constant 0 : index
    %c0_29 = arith.constant 0 : index
    %c0_30 = arith.constant 0 : index
    %68 = vector.load %arg7[%c0_27, %c0_28, %c0_29, %c0_30] : memref<1x1x1x128xf32, #tpu.memory_space<vmem>>, vector<1x1x1x128xf32>
    %69 = vector.shape_cast %68 : vector<1x1x1x128xf32> to vector<1x128xf32>
    %70 = vector.shape_cast %67 : vector<1x128xf32> to vector<1x1x1x128xf32>
    tpu.vector_store %arg7[%c0_27, %c0_28, %c0_29, %c0_30], %70 {strides = array<i32>} : memref<1x1x1x128xf32, #tpu.memory_space<vmem>>, vector<1x1x1x128xf32>,
    %c0_31 = arith.constant 0 : index
    %c0_32 = arith.constant 0 : index
    %c0_33 = arith.constant 0 : index
    %c0_34 = arith.constant 0 : index
    %71 = vector.load %arg8[%c0_31, %c0_32, %c0_33, %c0_34] : memref<1x1x1x128xf32, #tpu.memory_space<vmem>>, vector<1x1x1x128xf32>
    %72 = vector.shape_cast %71 : vector<1x1x1x128xf32> to vector<1x128xf32>
    %73 = arith.addf %72, %55 : vector<1x128xf32>
    %c0_35 = arith.constant 0 : index
    %c0_36 = arith.constant 0 : index
    %c0_37 = arith.constant 0 : index
    %c0_38 = arith.constant 0 : index
    %74 = vector.load %arg8[%c0_35, %c0_36, %c0_37, %c0_38] : memref<1x1x1x128xf32, #tpu.memory_space<vmem>>, vector<1x1x1x128xf32>
    %75 = vector.shape_cast %74 : vector<1x1x1x128xf32> to vector<1x128xf32>
    %76 = vector.shape_cast %73 : vector<1x128xf32> to vector<1x1x1x128xf32>
    tpu.vector_store %arg8[%c0_35, %c0_36, %c0_37, %c0_38], %76 {strides = array<i32>} : memref<1x1x1x128xf32, #tpu.memory_space<vmem>>, vector<1x1x1x128xf32>,
    return
  }
  func.func @transform_0(%arg0: i32, %arg1: i32, %arg2: i32, %arg3: memref<4xf32, #tpu.memory_space<smem>>) -> (i32, i32, i32, i32) {
    %c1_i32 = arith.constant 1 : i32
    %0 = arith.muli %arg1, %c1_i32 : i32
    %1 = arith.addi %0, %arg2 : i32
    %c0_i32 = arith.constant 0 : i32
    %2 = arith.minsi %1, %c0_i32 : i32
    %c0_i32_0 = arith.constant 0 : i32
    %c0_i32_1 = arith.constant 0 : i32
    %c0_i32_2 = arith.constant 0 : i32
    return %arg0, %c0_i32_0, %2, %c0_i32_1 : i32, i32, i32, i32
  }
  func.func @transform_1(%arg0: i32, %arg1: i32, %arg2: i32, %arg3: memref<4xf32, #tpu.memory_space<smem>>) -> (i32, i32, i32) {
    %c1_i32 = arith.constant 1 : i32
    %0 = arith.muli %arg1, %c1_i32 : i32
    %1 = arith.addi %0, %arg2 : i32
    %c0_i32 = arith.constant 0 : i32
    %2 = arith.minsi %1, %c0_i32 : i32
    %c0_i32_0 = arith.constant 0 : i32
    %c0_i32_1 = arith.constant 0 : i32
    return %arg0, %2, %c0_i32_0 : i32, i32, i32
  }
  func.func @transform_2(%arg0: i32, %arg1: i32, %arg2: i32, %arg3: memref<4xf32, #tpu.memory_space<smem>>) -> (i32, i32, i32, i32) {
    %c0_i32 = arith.constant 0 : i32
    %c0_i32_0 = arith.constant 0 : i32
    %c0_i32_1 = arith.constant 0 : i32
    return %arg0, %arg1, %c0_i32, %c0_i32_0 : i32, i32, i32, i32
  }
  func.func @transform_3(%arg0: i32, %arg1: i32, %arg2: i32, %arg3: memref<4xf32, #tpu.memory_space<smem>>) -> (i32, i32, i32, i32) {
    %c0_i32 = arith.constant 0 : i32
    %c0_i32_0 = arith.constant 0 : i32
    %c0_i32_1 = arith.constant 0 : i32
    return %arg0, %arg1, %c0_i32, %c0_i32_0 : i32, i32, i32, i32
  }
  func.func @transform_4(%arg0: i32, %arg1: i32, %arg2: i32, %arg3: memref<4xf32, #tpu.memory_space<smem>>) -> (i32, i32, i32, i32) {
    %c0_i32 = arith.constant 0 : i32
    %c0_i32_0 = arith.constant 0 : i32
    %c0_i32_1 = arith.constant 0 : i32
    return %arg0, %arg1, %c0_i32, %c0_i32_0 : i32, i32, i32, i32
  }
}

</mosaic_0001>

<llo_original>
// kernel: tpu_custom_call.1
$region0: #{tpu_custom_call.1}
  #allocation0 [shape = 'u32[]', space=smem, size = 0x4, offset = 0x4, fixed_abs, tag = 'smem constant byte address 0x4 - core index']
  #allocation1 [shape = 'u32[144,128]{1,0:T(1,128)}', space=vmem, size = 0x12000, scoped, tag = 'internal scratch']
  #allocation2 [shape = 's32[1]{0}', space=sflag, size = 0x4, scoped, tag = 'scoped memory for tpu_custom_call.1']
  #allocation3 [shape = 'u8[512]{0}', space=smem, size = 0x200, scoped, tag = 'prefetched SMEM operand 0']
  %s0 = inlined_call_operand.hbm [shape: f32[4], index: 0, kind: input, shape index: {}]
  %s1 = inlined_call_operand.hbm [shape: f32[2,4,2,128], index: 1, kind: input, shape index: {}]
  %s2 = inlined_call_operand.hbm [shape: s32[2,2,128], index: 2, kind: input, shape index: {}]
  %s3 = inlined_call_operand.hbm [shape: f32[2,1,1,128], index: 3, kind: output, shape index: {0}]
  %s4 = inlined_call_operand.hbm [shape: f32[2,1,1,128], index: 4, kind: output, shape index: {1}]
  %s5 = inlined_call_operand.hbm [shape: f32[2,1,1,128], index: 5, kind: output, shape index: {2}]
  %6 = xla_tuple %s3, %s4, %s5
  %s7 = sld [smem:[#allocation0]]
  $region69: #{tpu_custom_call.1} parent=0
    _
  %s9 = ssub.s32 1, %s7
  %s10 = scalar_select 0, %s9, %s7
  %12 = dma.hbm_to_smem %s0, 16, [#allocation3], [#allocation2]
  %13 = dma.done [#allocation2], 16
  %14 = sfence
  $region1: #{tpu_custom_call.1} parent=0
    #allocation4 [shape = 'u8[8192]{0}', space=vmem, size = 0x2000, scoped, tag = 'input window, operand 1']
    #allocation5 [shape = 's32[2]{0}', space=sflag, size = 0x8, scoped, tag = 'scoped memory for tpu_custom_call.1']
    #allocation6 [shape = 's32[2]{0}', space=sflag, size = 0x8, scoped, tag = 'scoped memory for tpu_custom_call.1']
    #allocation7 [shape = 'u8[2048]{0}', space=vmem, size = 0x800, scoped, tag = 'input window, operand 2']
    #allocation8 [shape = 's32[2]{0}', space=sflag, size = 0x8, scoped, tag = 'scoped memory for tpu_custom_call.1']
    #allocation9 [shape = 'u8[1024]{0}', space=vmem, size = 0x400, scoped, tag = 'output window, operand 0']
    #allocation10 [shape = 'u8[1024]{0}', space=vmem, size = 0x400, scoped, tag = 'output window, operand 1']
    #allocation11 [shape = 's32[2]{0}', space=sflag, size = 0x8, scoped, tag = 'scoped memory for tpu_custom_call.1']
    #allocation12 [shape = 'u8[1024]{0}', space=vmem, size = 0x400, scoped, tag = 'output window, operand 2']
    %15 = vsyncpa [#allocation5], 0
    %s16 = scalar_lea.sflag [#allocation5], 1
    %17 = vsyncpa %s16, 0
    %18 = vsyncpa [#allocation8], 0
    %s19 = scalar_lea.sflag [#allocation8], 1
    %20 = vsyncpa %s19, 0
    %21 = vsyncpa [#allocation6], 0
    %s22 = scalar_lea.sflag [#allocation6], 1
    %23 = vsyncpa %s22, 0
    %24 = vsyncpa [#allocation11], 0
    %s25 = scalar_lea.sflag [#allocation11], 1
    %26 = vsyncpa %s25, 0
    loop: start=0, step=1, limit=4
    $region2: #{tpu_custom_call.1} parent=1 // loop_pre_header
      _
    $region3: #{tpu_custom_call.1} parent=1 // loop_header
      %s28 = sphi 0, %s32
      %p29 = scmp.ge.s32.totalorder %s28, 4
      %s35 = sphi 0, %s54
      %s36 = sphi 0, %s50
      %s37 = sphi 0, %s46
      %s38 = sphi 0, %s35
      %s39 = sphi 0, %s36
      %s40 = sphi 0, %s37
      %s41 = sphi 0, %s38
      %s42 = sphi 0, %s39
      %s43 = sphi 0, %s40
      %s65 = sphi 0, %s67
      %s68 = sphi 0, %s65
      %s69 = sphi 0, %s68
      %s85 = sphi 0, %s69
      %s99 = sphi 0, %s101
      %s102 = sphi 0, %s99
      %s103 = sphi 0, %s102
      %s119 = sphi 0, %s103
      %s127 = sphi 0, %s129
      %s130 = sphi 0, %s127
      %s131 = sphi 0, %s130
      %s147 = sphi 0, %s131
      %s155 = sphi 0, %s157
      %s158 = sphi 0, %s155
      %s159 = sphi 0, %s158
      %s175 = sphi 0, %s159
      %s183 = sphi 0, %s185
      %s186 = sphi 0, %s183
      %s187 = sphi 0, %s186
      %s203 = sphi 0, %s187
    $region4: #{tpu_custom_call.1} parent=1 // loop_header_branch
      %31 = sbr.rel (%p29) target = $region8
    $region5: #{tpu_custom_call.1} parent=1 // loop_body
      %s33 = ssub.s32 %s28, 1
      %s34 = ssub.s32 %s28, 2
      %s44 = sadd.s32 1, %s37
      %p45 = scmp.ge.s32.totalorder %s44, 1
      %s46 = scalar_select %p45, 0, %s44
      %s47 = sadd.s32 1, %s36
      %s48 = scalar_select %p45, %s47, %s36
      %p49 = scmp.ge.s32.totalorder %s48, 1
      %s50 = scalar_select %p49, 0, %s48
      %s51 = sadd.s32 1, %s35
      %s52 = scalar_select %p49, %s51, %s35
      %p53 = scmp.ge.s32.totalorder %s52, 2
      %s54 = scalar_select %p53, 0, %s52
      %s55 = sadd.s32 %s36, %s37
      %p56 = scmp.lt.s32.totalorder %s55, 0
      %s57 = scalar_select %p56, %s55, 0
      %s58 = sadd.s32 %s50, %s46
      %p59 = scmp.lt.s32.totalorder %s58, 0
      %s60 = scalar_select %p59, %s58, 0
      %s61 = ssub.s32 %s35, %s54
      %s62 = ssub.s32 %s57, %s60
      %s63 = sor.u32 %s61, %s62
      %p64 = scmp.eq.s32.totalorder %s63, 0
      %s66 = sadd.s32 %s65, 1
      %s67 = scalar_select %p64, %s65, %s66
      %p70 = pneg %p64
      %p71 = scmp.eq.s32.totalorder %s28, 1
      %p72 = por %p70, %p71
      %p73 = scmp.ne.s32.totalorder %s65, %s68
      %p74 = scmp.eq.s32.totalorder %s28, 0
      %p75 = por %p73, %p74
      %p76 = scmp.ne.s32.totalorder %s65, %s68
      %p77 = scmp.eq.s32.totalorder %s33, 1
      %p78 = por %p76, %p77
      %p79 = scmp.ne.s32.totalorder %s68, %s69
      %p80 = scmp.eq.s32.totalorder %s33, 0
      %p81 = por %p79, %p80
      %p82 = scmp.ne.s32.totalorder %s68, %s69
      %p83 = scmp.eq.s32.totalorder %s34, 1
      %p84 = por %p82, %p83
      %p86 = scmp.ne.s32.totalorder %s69, %s85
      %p87 = scmp.eq.s32.totalorder %s34, 0
      %p88 = por %p86, %p87
      %s89 = sadd.s32 %s36, %s37
      %p90 = scmp.lt.s32.totalorder %s89, 0
      %s91 = scalar_select %p90, %s89, 0
      %s92 = sadd.s32 %s50, %s46
      %p93 = scmp.lt.s32.totalorder %s92, 0
      %s94 = scalar_select %p93, %s92, 0
      %s95 = ssub.s32 %s35, %s54
      %s96 = ssub.s32 %s91, %s94
      %s97 = sor.u32 %s95, %s96
      %p98 = scmp.eq.s32.totalorder %s97, 0
      %s100 = sadd.s32 %s99, 1
      %s101 = scalar_select %p98, %s99, %s100
      %p104 = pneg %p98
      %p105 = scmp.eq.s32.totalorder %s28, 1
      %p106 = por %p104, %p105
      %p107 = scmp.ne.s32.totalorder %s99, %s102
      %p108 = scmp.eq.s32.totalorder %s28, 0
      %p109 = por %p107, %p108
      %p110 = scmp.ne.s32.totalorder %s99, %s102
      %p111 = scmp.eq.s32.totalorder %s33, 1
      %p112 = por %p110, %p111
      %p113 = scmp.ne.s32.totalorder %s102, %s103
      %p114 = scmp.eq.s32.totalorder %s33, 0
      %p115 = por %p113, %p114
      %p116 = scmp.ne.s32.totalorder %s102, %s103
      %p117 = scmp.eq.s32.totalorder %s34, 1
      %p118 = por %p116, %p117
      %p120 = scmp.ne.s32.totalorder %s103, %s119
      %p121 = scmp.eq.s32.totalorder %s34, 0
      %p122 = por %p120, %p121
      %s123 = ssub.s32 %s35, %s54
      %s124 = ssub.s32 %s36, %s50
      %s125 = sor.u32 %s123, %s124
      %p126 = scmp.eq.s32.totalorder %s125, 0
      %s128 = sadd.s32 %s127, 1
      %s129 = scalar_select %p126, %s127, %s128
      %p132 = pneg %p126
      %p133 = scmp.eq.s32.totalorder %s28, 1
      %p134 = por %p132, %p133
      %p135 = scmp.ne.s32.totalorder %s127, %s130
      %p136 = scmp.eq.s32.totalorder %s28, 0
      %p137 = por %p135, %p136
      %p138 = scmp.ne.s32.totalorder %s127, %s130
      %p139 = scmp.eq.s32.totalorder %s33, 1
      %p140 = por %p138, %p139
      %p141 = scmp.ne.s32.totalorder %s130, %s131
      %p142 = scmp.eq.s32.totalorder %s33, 0
      %p143 = por %p141, %p142
      %p144 = scmp.ne.s32.totalorder %s130, %s131
      %p145 = scmp.eq.s32.totalorder %s34, 1
      %p146 = por %p144, %p145
      %p148 = scmp.ne.s32.totalorder %s131, %s147
      %p149 = scmp.eq.s32.totalorder %s34, 0
      %p150 = por %p148, %p149
      %s151 = ssub.s32 %s35, %s54
      %s152 = ssub.s32 %s36, %s50
      %s153 = sor.u32 %s151, %s152
      %p154 = scmp.eq.s32.totalorder %s153, 0
      %s156 = sadd.s32 %s155, 1
      %s157 = scalar_select %p154, %s155, %s156
      %p160 = pneg %p154
      %p161 = scmp.eq.s32.totalorder %s28, 1
      %p162 = por %p160, %p161
      %p163 = scmp.ne.s32.totalorder %s155, %s158
      %p164 = scmp.eq.s32.totalorder %s28, 0
      %p165 = por %p163, %p164
      %p166 = scmp.ne.s32.totalorder %s155, %s158
      %p167 = scmp.eq.s32.totalorder %s33, 1
      %p168 = por %p166, %p167
      %p169 = scmp.ne.s32.totalorder %s158, %s159
      %p170 = scmp.eq.s32.totalorder %s33, 0
      %p171 = por %p169, %p170
      %p172 = scmp.ne.s32.totalorder %s158, %s159
      %p173 = scmp.eq.s32.totalorder %s34, 1
      %p174 = por %p172, %p173
      %p176 = scmp.ne.s32.totalorder %s159, %s175
      %p177 = scmp.eq.s32.totalorder %s34, 0
      %p178 = por %p176, %p177
      %s179 = ssub.s32 %s35, %s54
      %s180 = ssub.s32 %s36, %s50
      %s181 = sor.u32 %s179, %s180
      %p182 = scmp.eq.s32.totalorder %s181, 0
      %s184 = sadd.s32 %s183, 1
      %s185 = scalar_select %p182, %s183, %s184
      %p188 = pneg %p182
      %p189 = scmp.eq.s32.totalorder %s28, 1
      %p190 = por %p188, %p189
      %p191 = scmp.ne.s32.totalorder %s183, %s186
      %p192 = scmp.eq.s32.totalorder %s28, 0
      %p193 = por %p191, %p192
      %p194 = scmp.ne.s32.totalorder %s183, %s186
      %p195 = scmp.eq.s32.totalorder %s33, 1
      %p196 = por %p194, %p195
      %p197 = scmp.ne.s32.totalorder %s186, %s187
      %p198 = scmp.eq.s32.totalorder %s33, 0
      %p199 = por %p197, %p198
      %p200 = scmp.ne.s32.totalorder %s186, %s187
      %p201 = scmp.eq.s32.totalorder %s34, 1
      %p202 = por %p200, %p201
      %p204 = scmp.ne.s32.totalorder %s187, %s203
      %p205 = scmp.eq.s32.totalorder %s34, 0
      %p206 = por %p204, %p205
      %p207 = scmp.le.s32.totalorder 1, %s28
      %p208 = scmp.lt.s32.totalorder %s28, 3
      %p209 = pnand %p207, %p208
      %p210 = pneg %p209
      // Predicated region
      $region9: #{tpu_custom_call.1} parent=5 // pred_check
        _
      $region10: #{tpu_custom_call.1} parent=5 // pred_check_branch
        %212 = sbr.rel (%p209) target = $region12
      $region11: #{tpu_custom_call.1} parent=5 // pred_region
        %s213 = ssub.s32 %s28, 1
      $region12: #{tpu_custom_call.1} parent=5 // pred_fallthru
        _
      %p214 = scmp.lt.s32.totalorder %s28, 2
      // Predicated region
      $region13: #{tpu_custom_call.1} parent=5 // pred_check
        %p215 = pneg %p214
      $region14: #{tpu_custom_call.1} parent=5 // pred_check_branch
        %217 = sbr.rel (%p215) target = $region16
      $region15: #{tpu_custom_call.1} parent=5 // pred_region
        // Predicated region
        $region17: #{tpu_custom_call.1} parent=15 // pred_check
          %p218 = pneg %p75
        $region18: #{tpu_custom_call.1} parent=15 // pred_check_branch
          %220 = sbr.rel (%p218) target = $region20
        $region19: #{tpu_custom_call.1} parent=15 // pred_region
          %s221 = sand.u32 %s65, 1
          %s222 = scalar_lea.sflag [#allocation5], %s221
          %s223 = sand.u32 %s65, 1
          %s224 = smul.addr %s223, 8
          %s225 = scalar_lea.vmem [#allocation4], %s224
          %s226 = sadd.s32 %s36, %s37
          %p227 = scmp.lt.s32.totalorder %s226, 0
          %s228 = scalar_select %p227, %s226, 0
          %s230 = ssub.s32 128, 128
          %231 = vsyncadd %s222, %s230
          %s232 = smul.addr %s35, 4
          %s233 = sadd.s32 %s228, %s232
          %s234 = smul.addr %s233, 32
          %s235 = scalar_lea.hbm %s1, %s234
          %s236 = sshll.u32 %s225, 4
          %s237 = int_to_ptr.vmem [resolvable:$true] %s236
          %242 = dma.hbm_to_vmem [thread:$0]  %s235, 128, %s237, %s222, 32, 32, 2
        $region20: #{tpu_custom_call.1} parent=15 // pred_fallthru
          _
        // Predicated region
        $region21: #{tpu_custom_call.1} parent=15 // pred_check
          %p243 = pneg %p109
        $region22: #{tpu_custom_call.1} parent=15 // pred_check_branch
          %245 = sbr.rel (%p243) target = $region24
        $region23: #{tpu_custom_call.1} parent=15 // pred_region
          %s246 = sand.u32 %s99, 1
          %s247 = scalar_lea.sflag [#allocation8], %s246
          %s248 = sand.u32 %s99, 1
          %s249 = smul.addr %s248, 2
          %s250 = scalar_lea.vmem [#allocation7], %s249
          %s251 = sadd.s32 %s36, %s37
          %p252 = scmp.lt.s32.totalorder %s251, 0
          %s253 = scalar_select %p252, %s251, 0
          %s255 = ssub.s32 32, 32
          %256 = vsyncadd %s247, %s255
          %s257 = sadd.s32 %s253, %s35
          %s258 = smul.addr %s257, 32
          %s259 = scalar_lea.hbm %s2, %s258
          %s261 = sshll.u32 %s250, 4
          %s262 = int_to_ptr.vmem [resolvable:$true] %s261
          %264 = dma.hbm_to_vmem [thread:$0]  %s259, 32, %s262, %s247
        $region24: #{tpu_custom_call.1} parent=15 // pred_fallthru
          _
      $region16: #{tpu_custom_call.1} parent=5 // pred_fallthru
        _
      %p265 = scmp.le.s32.totalorder 1, %s28
      %p266 = scmp.lt.s32.totalorder %s28, 3
      %p267 = pnand %p265, %p266
      %p268 = pneg %p267
      // Predicated region
      $region25: #{tpu_custom_call.1} parent=5 // pred_check
        _
      $region26: #{tpu_custom_call.1} parent=5 // pred_check_branch
        %270 = sbr.rel (%p267) target = $region28
      $region27: #{tpu_custom_call.1} parent=5 // pred_region
        %s271 = ssub.s32 %s28, 1
        %s272 = sand.u32 %s68, 1
        %s273 = scalar_lea.sflag [#allocation5], %s272
        %s274 = sand.u32 %s68, 1
        %s275 = smul.addr %s274, 8
        %s276 = scalar_lea.vmem [#allocation4], %s275
        // Predicated region
        $region29: #{tpu_custom_call.1} parent=27 // pred_check
          %p277 = pneg %p81
        $region30: #{tpu_custom_call.1} parent=27 // pred_check_branch
          %279 = sbr.rel (%p277) target = $region32
        $region31: #{tpu_custom_call.1} parent=27 // pred_region
          %280 = dma.done %s273, 128
        $region32: #{tpu_custom_call.1} parent=27 // pred_fallthru
          _
        %s281 = sand.u32 %s102, 1
        %s282 = scalar_lea.sflag [#allocation8], %s281
        %s283 = sand.u32 %s102, 1
        %s284 = smul.addr %s283, 2
        %s285 = scalar_lea.vmem [#allocation7], %s284
        // Predicated region
        $region33: #{tpu_custom_call.1} parent=27 // pred_check
          %p286 = pneg %p115
        $region34: #{tpu_custom_call.1} parent=27 // pred_check_branch
          %288 = sbr.rel (%p286) target = $region36
        $region35: #{tpu_custom_call.1} parent=27 // pred_region
          %289 = dma.done %s282, 32
        $region36: #{tpu_custom_call.1} parent=27 // pred_fallthru
          _
        %s290 = sand.u32 %s68, 1
        %s291 = scalar_lea.sflag [#allocation5], %s290
        %s292 = sand.u32 %s68, 1
        %s293 = smul.addr %s292, 8
        %s294 = scalar_lea.vmem [#allocation4], %s293
        %p295 = pneg %p81
        %p296 = pneg %p78
        %s297 = sand.u32 %s102, 1
        %s298 = scalar_lea.sflag [#allocation8], %s297
        %s299 = sand.u32 %s102, 1
        %s300 = smul.addr %s299, 2
        %s301 = scalar_lea.vmem [#allocation7], %s300
        %p302 = pneg %p115
        %p303 = pneg %p112
        %p304 = pneg %p143
        %p305 = pneg %p140
        %s306 = sand.u32 %s130, 1
        %s307 = scalar_lea.sflag [#allocation6], %s306
        %s308 = sand.u32 %s130, 1
        %s309 = scalar_lea.vmem [#allocation9], %s308
        %p310 = pneg %p171
        %p311 = pneg %p168
        %s312 = sand.u32 %s33, 1
        %s313 = scalar_lea.sflag [#allocation11], %s312
        %s314 = sand.u32 %s158, 1
        %s315 = scalar_lea.vmem [#allocation10], %s314
        %p316 = pneg %p199
        %p317 = pneg %p196
        %s318 = sand.u32 %s33, 1
        %s319 = scalar_lea.sflag [#allocation11], %s318
        %s320 = sand.u32 %s186, 1
        %s321 = scalar_lea.vmem [#allocation12], %s320
        %s322 = sadd.s32 %s39, %s40
        %p323 = scmp.lt.s32.totalorder %s322, 0
        %s324 = scalar_select %p323, %s322, 0
        %s325 = sadd.s32 %s39, %s40
        %p326 = scmp.lt.s32.totalorder %s325, 0
        %s327 = scalar_select %p326, %s325, 0
        %v328 = vld [vmem:[%s276] sm:$0x3]
        %v329 = vld [vmem:[%s276 + $0x2] sm:$0x3]
        %v330 = vld [vmem:[%s276 + $0x4] sm:$0x3]
        %v331 = vld [vmem:[%s276 + $0x6] sm:$0x3]
        %v332 = vld [vmem:[%s285] sm:$0x3]
        %vm333 = vcmask 1041408
        %v334 = vsel %vm333, %v328, -inf
        %v335 = vsel %vm333, %v329, -inf
        %v336 = vsel %vm333, %v330, -inf
        %v337 = vsel %vm333, %v331, -inf
        %v338 = vmax.f32 %v334, %v335
        %v339 = vmax.f32 %v336, %v337
        %v340 = vmax.f32 %v338, %v339
        %v341 = vsub.f32 %v328, %v340
        %v342 = vsub.f32 %v329, %v340
        %v343 = vsub.f32 %v330, %v340
        %v344 = vsub.f32 %v331, %v340
        %v345 = vmul.f32 %v341, 1.442695
        %v346 = vpow.pop %v345
        %v347 = vmul.f32 %v342, 1.442695
        %v348 = vpow.pop %v347
        %v349 = vmul.f32 %v343, 1.442695
        %v350 = vpow.pop %v349
        %v351 = vmul.f32 %v344, 1.442695
        %v352 = vpow.pop %v351
        %v353 = vsel %vm333, %v346, 0.0
        %v354 = vsel %vm333, %v348, 0.0
        %v355 = vadd.f32 %v353, %v354
        %v356 = vsel %vm333, %v350, 0.0
        %v357 = vadd.f32 %v355, %v356
        %v358 = vsel %vm333, %v352, 0.0
        %v359 = vadd.f32 %v357, %v358
        %v360 = vlog2.pop %v359
        %v361 = vmul.f32 %v360, 0.6931472
        %v362 = vadd.f32 %v340, %v361
        %vm363 = vcmp.eq.s32.totalorder %v332, 0
        %v364 = vsel %vm363, %v328, 0.0
        %s365 = sld [smem:[#allocation3]]
        %v366 = vstv %s365
        %v367 = vsel %vm363, %v366, 0.0
        %vm368 = vcmp.eq.s32.totalorder %v332, 1
        %v369 = vsel %vm368, %v329, %v364
        %s370 = sld [smem:[#allocation3 + $0x1]]
        %v371 = vstv %s370
        %v372 = vsel %vm368, %v371, %v367
        %vm373 = vcmp.eq.s32.totalorder %v332, 2
        %v374 = vsel %vm373, %v330, %v369
        %s375 = sld [smem:[#allocation3 + $0x2]]
        %v376 = vstv %s375
        %v377 = vsel %vm373, %v376, %v372
        %vm378 = vcmp.eq.s32.totalorder %v332, 3
        %v379 = vsel %vm378, %v331, %v374
        %s380 = sld [smem:[#allocation3 + $0x3]]
        %v381 = vstv %s380
        %v382 = vsel %vm378, %v381, %v377
        %v383 = vsub.f32 %v362, %v379
        %v384 = vsub.f32 %v379, %v362
        %v385 = vmul.f32 %v384, 1.442695
        %v386 = vpow.pop %v385
        %v387 = vmul.f32 %v382, %v383
        %v388 = vsel %vm333, %v387, 0.0
        %v389 = vrot.slane %v388, 4
        %v390 = vadd.f32 %v388, %v389
        %v391 = vrot.slane %v390, 2
        %v392 = vadd.f32 %v390, %v391
        %v393 = vrot.slane %v392, 1
        %v394 = vadd.f32 %v392, %v393
        %v395 = vsel %vm333, %v382, 0.0
        %v396 = vrot.slane %v395, 4
        %v397 = vadd.f32 %v395, %v396
        %v398 = vrot.slane %v397, 2
        %v399 = vadd.f32 %v397, %v398
        %v400 = vrot.slane %v399, 1
        %v401 = vadd.f32 %v399, %v400
        %v402 = vsel %vm333, %v386, 0.0
        %v403 = vrot.slane %v402, 4
        %v404 = vadd.f32 %v402, %v403
        %v405 = vrot.slane %v404, 2
        %v406 = vadd.f32 %v404, %v405
        %v407 = vrot.slane %v406, 1
        %v408 = vadd.f32 %v406, %v407
        %p409 = scmp.eq.s32.totalorder %s40, 0
        // Predicated region
        $region37: #{tpu_custom_call.1} parent=27 // pred_check
          %p410 = pneg %p409
        $region38: #{tpu_custom_call.1} parent=27 // pred_check_branch
          %412 = sbr.rel (%p410) target = $region40
        $region39: #{tpu_custom_call.1} parent=27 // pred_region
          %413 = vst [vmem:[%s309] sm:$0x1] 0.0
          %414 = vst [vmem:[%s315] sm:$0x1] 0.0
          %415 = vst [vmem:[%s321] sm:$0x1] 0.0
        $region40: #{tpu_custom_call.1} parent=27 // pred_fallthru
          _
        %v416 = vld [vmem:[%s309] sm:$0x1]
        %v417 = vadd.f32 %v416, %v394
        %418 = vst [vmem:[%s309] sm:$0x1] %v417
        %v419 = vld [vmem:[%s315] sm:$0x1]
        %v420 = vadd.f32 %v419, %v401
        %421 = vst [vmem:[%s315] sm:$0x1] %v420
        %v422 = vld [vmem:[%s321] sm:$0x1]
        %v423 = vadd.f32 %v422, %v408
        %424 = vst [vmem:[%s321] sm:$0x1] %v423
        %s425 = sand.u32 %s130, 1
        %s426 = scalar_lea.sflag [#allocation6], %s425
        %s427 = sand.u32 %s130, 1
        %s428 = scalar_lea.vmem [#allocation9], %s427
        %s429 = sand.u32 %s33, 1
        %s430 = scalar_lea.sflag [#allocation11], %s429
        %s431 = sand.u32 %s158, 1
        %s432 = scalar_lea.vmem [#allocation10], %s431
        %s433 = sand.u32 %s33, 1
        %s434 = scalar_lea.sflag [#allocation11], %s433
        %s435 = sand.u32 %s186, 1
        %s436 = scalar_lea.vmem [#allocation12], %s435
        // Predicated region
        $region41: #{tpu_custom_call.1} parent=27 // pred_check
          %p437 = pneg %p140
        $region42: #{tpu_custom_call.1} parent=27 // pred_check_branch
          %439 = sbr.rel (%p437) target = $region44
        $region43: #{tpu_custom_call.1} parent=27 // pred_region
          %s441 = ssub.s32 16, 16
          %442 = vsyncadd %s426, %s441
          %s443 = sadd.s32 %s39, %s38
          %s444 = smul.addr %s443, 16
          %s445 = scalar_lea.hbm %s3, %s444
          %s447 = sshll.u32 %s428, 4
          %s448 = int_to_ptr.vmem [resolvable:$true] %s447
          %450 = dma.vmem_to_hbm [thread:$0]  %s448, 16, %s445, %s426
        $region44: #{tpu_custom_call.1} parent=27 // pred_fallthru
          _
        // Predicated region
        $region45: #{tpu_custom_call.1} parent=27 // pred_check
          %p451 = pneg %p168
        $region46: #{tpu_custom_call.1} parent=27 // pred_check_branch
          %453 = sbr.rel (%p451) target = $region48
        $region47: #{tpu_custom_call.1} parent=27 // pred_region
          %s455 = ssub.s32 16, 16
          %456 = vsyncadd %s430, %s455
          %s457 = sadd.s32 %s39, %s38
          %s458 = smul.addr %s457, 16
          %s459 = scalar_lea.hbm %s4, %s458
          %s461 = sshll.u32 %s432, 4
          %s462 = int_to_ptr.vmem [resolvable:$true] %s461
          %464 = dma.vmem_to_hbm [thread:$0]  %s462, 16, %s459, %s430
        $region48: #{tpu_custom_call.1} parent=27 // pred_fallthru
          _
        // Predicated region
        $region49: #{tpu_custom_call.1} parent=27 // pred_check
          %p465 = pneg %p196
        $region50: #{tpu_custom_call.1} parent=27 // pred_check_branch
          %467 = sbr.rel (%p465) target = $region52
        $region51: #{tpu_custom_call.1} parent=27 // pred_region
          %s469 = ssub.s32 16, 16
          %470 = vsyncadd %s434, %s469
          %s471 = sadd.s32 %s39, %s38
          %s472 = smul.addr %s471, 16
          %s473 = scalar_lea.hbm %s5, %s472
          %s475 = sshll.u32 %s436, 4
          %s476 = int_to_ptr.vmem [resolvable:$true] %s475
          %478 = dma.vmem_to_hbm [thread:$0]  %s476, 16, %s473, %s434
        $region52: #{tpu_custom_call.1} parent=27 // pred_fallthru
          _
      $region28: #{tpu_custom_call.1} parent=5 // pred_fallthru
        _
      %p479 = scmp.le.s32.totalorder 2, %s28
      // Predicated region
      $region53: #{tpu_custom_call.1} parent=5 // pred_check
        %p480 = pneg %p479
      $region54: #{tpu_custom_call.1} parent=5 // pred_check_branch
        %482 = sbr.rel (%p480) target = $region56
      $region55: #{tpu_custom_call.1} parent=5 // pred_region
        %s483 = ssub.s32 %s28, 2
        // Predicated region
        $region57: #{tpu_custom_call.1} parent=55 // pred_check
          %p484 = pneg %p146
        $region58: #{tpu_custom_call.1} parent=55 // pred_check_branch
          %486 = sbr.rel (%p484) target = $region60
        $region59: #{tpu_custom_call.1} parent=55 // pred_region
          %s487 = sand.u32 %s131, 1
          %s488 = scalar_lea.sflag [#allocation6], %s487
          %s489 = sand.u32 %s131, 1
          %s490 = scalar_lea.vmem [#allocation9], %s489
          %491 = dma.done %s488, 16
        $region60: #{tpu_custom_call.1} parent=55 // pred_fallthru
          _
        // Predicated region
        $region61: #{tpu_custom_call.1} parent=55 // pred_check
          %p492 = pneg %p174
        $region62: #{tpu_custom_call.1} parent=55 // pred_check_branch
          %494 = sbr.rel (%p492) target = $region64
        $region63: #{tpu_custom_call.1} parent=55 // pred_region
          %s495 = sand.u32 %s34, 1
          %s496 = scalar_lea.sflag [#allocation11], %s495
          %s497 = sand.u32 %s159, 1
          %s498 = scalar_lea.vmem [#allocation10], %s497
          %499 = dma.done %s496, 16
        $region64: #{tpu_custom_call.1} parent=55 // pred_fallthru
          _
        // Predicated region
        $region65: #{tpu_custom_call.1} parent=55 // pred_check
          %p500 = pneg %p202
        $region66: #{tpu_custom_call.1} parent=55 // pred_check_branch
          %502 = sbr.rel (%p500) target = $region68
        $region67: #{tpu_custom_call.1} parent=55 // pred_region
          %s503 = sand.u32 %s34, 1
          %s504 = scalar_lea.sflag [#allocation11], %s503
          %s505 = sand.u32 %s187, 1
          %s506 = scalar_lea.vmem [#allocation12], %s505
          %507 = dma.done %s504, 16
        $region68: #{tpu_custom_call.1} parent=55 // pred_fallthru
          _
      $region56: #{tpu_custom_call.1} parent=5 // pred_fallthru
        _
    $region6: #{tpu_custom_call.1} parent=1 // loop_footer
      %s32 = sadd.s32 1, %s28
    $region7: #{tpu_custom_call.1} parent=1 // loop_footer_branch
      %27 = sbr.rel target = $region3
    $region8: #{tpu_custom_call.1} parent=1 // loop_exit
      _
    %508 = vsyncpa [#allocation5], 1
    %s509 = scalar_lea.sflag [#allocation5], 1
    %510 = vsyncpa %s509, 1
    %511 = vsyncpa [#allocation8], 1
    %s512 = scalar_lea.sflag [#allocation8], 1
    %513 = vsyncpa %s512, 1
    %514 = vsyncpa [#allocation6], 1
    %s515 = scalar_lea.sflag [#allocation6], 1
    %516 = vsyncpa %s515, 1
    %517 = vsyncpa [#allocation11], 1
    %s518 = scalar_lea.sflag [#allocation11], 1
    %519 = vsyncpa %s518, 1

</llo_original>
